<compile_context>
chip_gen: v6e
topology: v6e:2x2x1
jax: 0.10.0
libtpu: 0.0.40
codegen_flags: <defaults>
</compile_context>

<pallas_src>
import functools
import math

import jax
import jax.numpy as jnp
from jax import lax
from jax.experimental import pallas as pl
from jax.experimental.pallas import tpu as pltpu

_LANE = 128


def _round_up(a: int, b: int) -> int:
    return (a + b - 1) // b * b


def _cdiv(a: int, b: int) -> int:
    return (a + b - 1) // b


def _mean_rows_kernel(x_ref, o_ref, acc_ref, *, inv_l, l_tile, l_rem):
    """Row-sum accumulate of one (row_tile, l_tile) block; finalize -> mean.

    x_ref   : (row_tile, l_tile) input block (VMEM)
    o_ref   : (row_tile, 1)      output block (written only at the last L step)
    acc_ref : (row_tile, 128)    lane-dense f32 accumulator (resident over L axis)
    inv_l   : 1 / true_L (static)
    l_tile  : static block width (multiple of 128)
    l_rem   : static number of valid lanes in the LAST L block (1..l_tile)
    """
    k = pl.program_id(1)
    n_k = pl.num_programs(1)

    @pl.when(k == 0)
    def _init():
        acc_ref[...] = jnp.zeros_like(acc_ref)

    def accumulate(valid_w):
        # Pure-VPU adds over static 128-lane chunks (static ref slices are free
        # views).  Out-of-bounds lanes of the tail chunk are zero-SELECTED so
        # stale VMEM garbage never reaches the sum.
        n_full = valid_w // _LANE
        for j in range(n_full):
            acc_ref[...] += x_ref[:, j * _LANE:(j + 1) * _LANE].astype(jnp.float32)
        tail = valid_w - n_full * _LANE
        if tail:
            chunk = x_ref[:, n_full * _LANE:(n_full + 1) * _LANE].astype(jnp.float32)
            lane = lax.broadcasted_iota(jnp.int32, chunk.shape, 1)
            acc_ref[...] += jnp.where(lane < tail, chunk, 0.0)

    if l_rem == l_tile:          # L divides evenly: every block is full
        accumulate(l_tile)
    else:                        # ragged last block handled in-kernel (no jnp.pad)
        @pl.when(k < n_k - 1)
        def _full_blocks():
            accumulate(l_tile)

        @pl.when(k == n_k - 1)
        def _last_block():
            accumulate(l_rem)

    @pl.when(k == n_k - 1)
    def _finalize():
        # Single cross-lane (XLU) reduce + 1/true_L scale, once per row block.
        row_sum = jnp.sum(acc_ref[...], axis=-1, keepdims=True)
        o_ref[...] = (row_sum * inv_l).astype(o_ref.dtype)


def _choose_tiles(R, L, itemsize, row_tile, l_tile, target_block_bytes,
                  max_l_tile=8192, max_row_tile=1024):
    # dtype-aware sublane granularity: (8,128) f32 / (16,128) bf16 / (32,128) int8
    sub = 32 if itemsize == 1 else (16 if itemsize == 2 else 8)

    if l_tile is None:
        l_tile = min(_round_up(L, _LANE), max_l_tile)
    if l_tile % _LANE != 0:
        raise ValueError("l_tile must be a multiple of 128")

    if row_tile is None:
        rows_for_target = max(sub, target_block_bytes // max(1, l_tile * itemsize))
        row_tile = min(_round_up(R, sub), _round_up(rows_for_target, sub), max_row_tile)
        # Megacore: keep >= 2 blocks on the 'parallel' row axis whenever R allows,
        # so v7x's second TensorCore gets work even for few-row inputs.
        # TODO(synk): for very small R with very long L, splitting the L reduction
        # across cores (per-core partial sums combined in the wrapper) would be
        # the better megacore strategy.
        if R >= 2 * sub and _cdiv(R, row_tile) < 2:
            row_tile = _round_up(_cdiv(R, 2), sub)
    if row_tile % 8 != 0 and row_tile != R:
        raise ValueError("row_tile must be a multiple of 8 (or equal to R)")

    return row_tile, l_tile


def mean_last_dim(x, *, row_tile=None, l_tile=None,
                  target_block_bytes=8 << 20, min_pallas_elems=1 << 16):
    """Mean over the last axis of x via a tiled Pallas TPU row-sum reduction.

    Flattens x to (R, L), grids over (rows: 'parallel', L: 'arbitrary'),
    accumulates per-row partial sums in a lane-dense f32 VMEM scratch, and does
    the cross-lane reduce + 1/L scale once at the final reduction step.  Ragged
    R / L are handled without any padding copy in HBM.
    """
    orig_shape = x.shape
    L = int(orig_shape[-1])
    lead = orig_shape[:-1]
    R = int(math.prod(lead)) if lead else 1

    # Degenerate / tiny inputs: fused XLA reduce beats kernel launch + grid overhead.
    if L == 0 or R == 0 or x.size < min_pallas_elems:
        return jnp.mean(x, axis=-1)

    x2 = x.reshape(R, L)
    itemsize = x2.dtype.itemsize
    row_tile, l_tile = _choose_tiles(R, L, itemsize, row_tile, l_tile,
                                     target_block_bytes)

    n_row_blocks = _cdiv(R, row_tile)
    n_k = _cdiv(L, l_tile)
    l_rem = L - (n_k - 1) * l_tile          # valid lanes in the last L block
    r_out = n_row_blocks * row_tile         # output padded to full row blocks; sliced below
    inv_l = 1.0 / float(L)                  # scale by the TRUE length, once

    kernel = functools.partial(_mean_rows_kernel, inv_l=inv_l,
                               l_tile=l_tile, l_rem=l_rem)

    # VMEM budget: 2 double-buffered input blocks + f32 accumulator + output
    # blocks + headroom.  Only raise the scoped-VMEM limit when actually needed.
    in_block = row_tile * l_tile * itemsize
    vmem_need = (2 * in_block + row_tile * _LANE * 4
                 + 2 * row_tile * itemsize + (2 << 20))
    compiler_kwargs = dict(dimension_semantics=("parallel", "arbitrary"))
    if vmem_need > (12 << 20):
        compiler_kwargs["vmem_limit_bytes"] = int(vmem_need * 5 // 4)

    out = pl.pallas_call(
        kernel,
        out_shape=jax.ShapeDtypeStruct((r_out, 1), x.dtype),
        grid=(n_row_blocks, n_k),
        in_specs=[pl.BlockSpec((row_tile, l_tile), lambda i, k: (i, k))],
        out_specs=pl.BlockSpec((row_tile, 1), lambda i, k: (i, 0)),
        scratch_shapes=[pltpu.VMEM((row_tile, _LANE), jnp.float32)],
        compiler_params=pltpu.CompilerParams(**compiler_kwargs),
    )(x2)

    return out[:R, 0].reshape(lead)


class BaseModelPallas:
    """JAX/Pallas port of base_Model (forward = mean over the last axis)."""

    def __init__(self, key=None, min_pallas_elems=1 << 16):
        self.min_pallas_elems = min_pallas_elems
        # Deterministic init of the UNUSED placeholder Conv1d(3, 1, 1) params
        # (weight (1,3,1), bias (1,)) -- mirrors __init__, never applied in forward.
        if key is None:
            key = jax.random.PRNGKey(42)
        wk, bk = jax.random.split(key)
        self.placeholder_weight = jax.random.normal(wk, (1, 3, 1), jnp.float32) * 0.1
        self.placeholder_bias = jax.random.normal(bk, (1,), jnp.float32) * 0.1

    def forward(self, x):
        """Return anomaly score (mean over last dim)."""
        return mean_last_dim(x, min_pallas_elems=self.min_pallas_elems)

    def get_scores(self, x):
        d_scores = self.forward(x)                # (B, C)
        # TODO(synk): the tiny (B,C)->(B,) max could be folded into the kernel's
        # finalize step; left as plain jnp.max since it's negligible glue.
        w_scores = jnp.max(d_scores, axis=-1)     # (B,)
        return (w_scores, d_scores)


if __name__ == "__main__":
    key = jax.random.PRNGKey(0)
    k1, k2, k3, k4 = jax.random.split(key, 4)

    # 1) Small shape consistent with the module (channels=3 matches Conv1d(3,1,1)).
    #    Forces the Pallas path; exercises L < 128 (fully masked tail chunk) and a
    #    partial row block (R=6 inside one 8-row block), with no wrapper padding.
    x_small = jax.random.normal(k1, (2, 3, 16), jnp.float32)
    model = BaseModelPallas(min_pallas_elems=0)
    scores = model.forward(x_small)
    jax.block_until_ready(scores)
    ref_small = jnp.mean(x_small, axis=-1)
    assert scores.shape == (2, 3)
    assert jnp.allclose(scores, ref_small, atol=1e-5, rtol=1e-5)

    w_scores, d_scores = model.get_scores(x_small)
    jax.block_until_ready(w_scores)
    assert w_scores.shape == (2,)
    assert jnp.allclose(w_scores, jnp.max(ref_small, axis=-1), atol=1e-5, rtol=1e-5)

    # 2) Forced multi-block grid: 2 row blocks x 3 reduction steps with a ragged
    #    last L block (1200 = 2*512 + 176) -- exercises init/accumulate/finalize
    #    gating and the in-kernel tail mask.
    x_med = jax.random.normal(k2, (2, 12, 1200), jnp.float32)
    out_med = mean_last_dim(x_med, row_tile=16, l_tile=512, min_pallas_elems=0)
    jax.block_until_ready(out_med)
    assert out_med.shape == (2, 12)
    assert jnp.allclose(out_med, jnp.mean(x_med, axis=-1), atol=1e-5, rtol=1e-5)

    # 3) Auto-tiled ragged shape: exercises the tile chooser (row split so the
    #    'parallel' axis has 2 blocks for megacore) and a ragged L block
    #    (2000 valid lanes inside a 2048-wide block, 80 masked).
    x_auto = jax.random.normal(k3, (4, 32, 2000), jnp.float32)
    out_auto = mean_last_dim(x_auto, min_pallas_elems=0)
    jax.block_until_ready(out_auto)
    assert out_auto.shape == (4, 32)
    assert jnp.allclose(out_auto, jnp.mean(x_auto, axis=-1), atol=1e-5, rtol=1e-5)

    # 4) bf16 input: exercises the dtype-aware (16,128) sublane rounding and the
    #    f32-accumulate -> bf16 cast path.
    x_bf = jax.random.normal(k4, (4, 16, 384), jnp.float32).astype(jnp.bfloat16)
    out_bf = mean_last_dim(x_bf, min_pallas_elems=0)
    jax.block_until_ready(out_bf)
    ref_bf = jnp.mean(x_bf.astype(jnp.float32), axis=-1).astype(jnp.bfloat16)
    assert out_bf.dtype == jnp.bfloat16 and out_bf.shape == (4, 16)
    assert jnp.allclose(out_bf.astype(jnp.float32), ref_bf.astype(jnp.float32),
                        atol=1e-2, rtol=1e-2)

    print("KERNEL_OK")
</pallas_src>

<mosaic_0001>
module attributes {stable_mosaic.version = 11 : i64} {
  func.func @_mean_rows_kernel(%arg0: i32, %arg1: i32, %arg2: memref<8x128xf32, #tpu.memory_space<vmem>>, %arg3: memref<8x1xf32, #tpu.memory_space<vmem>>, %arg4: memref<8x128xf32, #tpu.memory_space<vmem>>) attributes {dimension_semantics = [#tpu.dimension_semantics<parallel>, #tpu.dimension_semantics<arbitrary>], iteration_bounds = array<i64: 1, 1>, scalar_prefetch = 0 : i64, scratch_operands = 1 : i64, tpu.core_type = #tpu.core_type<tc>, window_params = [{transform_indices = @transform_0, window_bounds = array<i64: 8, 128>}, {transform_indices = @transform_1, window_bounds = array<i64: 8, 1>}]} {
    %c0_i32 = arith.constant 0 : i32
    %0 = arith.cmpi eq, %arg1, %c0_i32 : i32
    %1 = arith.extui %0 : i1 to i32
    %c0_i32_0 = arith.constant 0 : i32
    %2 = arith.cmpi ne, %1, %c0_i32_0 : i32
    scf.if %2 {
      %cst = arith.constant 0.000000e+00 : f32
      %12 = vector.broadcast %cst : f32 to vector<8x128xf32>
      %c0 = arith.constant 0 : index
      %c0_7 = arith.constant 0 : index
      %13 = vector.load %arg4[%c0, %c0_7] : memref<8x128xf32, #tpu.memory_space<vmem>>, vector<8x128xf32>
      tpu.vector_store %arg4[%c0, %c0_7], %12 {strides = array<i32>} : memref<8x128xf32, #tpu.memory_space<vmem>>, vector<8x128xf32>,
    } else {
    }
    %c0_i32_1 = arith.constant 0 : i32
    %3 = arith.cmpi slt, %arg1, %c0_i32_1 : i32
    %4 = arith.extui %3 : i1 to i32
    %c0_i32_2 = arith.constant 0 : i32
    %5 = arith.cmpi ne, %4, %c0_i32_2 : i32
    scf.if %5 {
      %c0 = arith.constant 0 : index
      %c0_7 = arith.constant 0 : index
      %12 = vector.load %arg4[%c0, %c0_7] : memref<8x128xf32, #tpu.memory_space<vmem>>, vector<8x128xf32>
      %c0_8 = arith.constant 0 : index
      %c0_9 = arith.constant 0 : index
      %13 = vector.load %arg2[%c0_8, %c0_9] : memref<8x128xf32, #tpu.memory_space<vmem>>, vector<8x128xf32>
      %14 = arith.addf %12, %13 : vector<8x128xf32>
      %c0_10 = arith.constant 0 : index
      %c0_11 = arith.constant 0 : index
      %15 = vector.load %arg4[%c0_10, %c0_11] : memref<8x128xf32, #tpu.memory_space<vmem>>, vector<8x128xf32>
      tpu.vector_store %arg4[%c0_10, %c0_11], %14 {strides = array<i32>} : memref<8x128xf32, #tpu.memory_space<vmem>>, vector<8x128xf32>,
    } else {
    }
    %c0_i32_3 = arith.constant 0 : i32
    %6 = arith.cmpi eq, %arg1, %c0_i32_3 : i32
    %7 = arith.extui %6 : i1 to i32
    %c0_i32_4 = arith.constant 0 : i32
    %8 = arith.cmpi ne, %7, %c0_i32_4 : i32
    scf.if %8 {
      %c0 = arith.constant 0 : index
      %c0_7 = arith.constant 0 : index
      %12 = vector.load %arg2[%c0, %c0_7] : memref<8x128xf32, #tpu.memory_space<vmem>>, vector<8x128xf32>
      %13 = tpu.iota {dimensions = array<i32: 1>} : vector<8x128xi32>
      %c0_8 = arith.constant 0 : index
      %c0_9 = arith.constant 0 : index
      %14 = vector.load %arg4[%c0_8, %c0_9] : memref<8x128xf32, #tpu.memory_space<vmem>>, vector<8x128xf32>
      %c16_i32 = arith.constant 16 : i32
      %15 = vector.broadcast %c16_i32 : i32 to vector<8x128xi32>
      %16 = arith.cmpi slt, %13, %15 : vector<8x128xi32>
      %cst = arith.constant 0.000000e+00 : f32
      %17 = vector.broadcast %cst : f32 to vector<8x128xf32>
      %18 = arith.select %16, %12, %17 : vector<8x128xi1>, vector<8x128xf32>
      %19 = arith.addf %14, %18 : vector<8x128xf32>
      %c0_10 = arith.constant 0 : index
      %c0_11 = arith.constant 0 : index
      %20 = vector.load %arg4[%c0_10, %c0_11] : memref<8x128xf32, #tpu.memory_space<vmem>>, vector<8x128xf32>
      tpu.vector_store %arg4[%c0_10, %c0_11], %19 {strides = array<i32>} : memref<8x128xf32, #tpu.memory_space<vmem>>, vector<8x128xf32>,
    } else {
    }
    %c0_i32_5 = arith.constant 0 : i32
    %9 = arith.cmpi eq, %arg1, %c0_i32_5 : i32
    %10 = arith.extui %9 : i1 to i32
    %c0_i32_6 = arith.constant 0 : i32
    %11 = arith.cmpi ne, %10, %c0_i32_6 : i32
    scf.if %11 {
      %c0 = arith.constant 0 : index
      %c0_7 = arith.constant 0 : index
      %12 = vector.load %arg4[%c0, %c0_7] : memref<8x128xf32, #tpu.memory_space<vmem>>, vector<8x128xf32>
      %cst = arith.constant dense<0.000000e+00> : vector<8xf32>
      %13 = vector.multi_reduction <add>, %12, %cst [1] : vector<8x128xf32> to vector<8xf32>
      %14 = vector.shape_cast %13 : vector<8xf32> to vector<8x1xf32>
      %cst_8 = arith.constant 6.250000e-02 : f32
      %15 = vector.broadcast %cst_8 : f32 to vector<8x1xf32>
      %16 = arith.mulf %14, %15 : vector<8x1xf32>
      %c0_9 = arith.constant 0 : index
      %c0_10 = arith.constant 0 : index
      %17 = vector.load %arg3[%c0_9, %c0_10] : memref<8x1xf32, #tpu.memory_space<vmem>>, vector<8x1xf32>
      tpu.vector_store %arg3[%c0_9, %c0_10], %16 {strides = array<i32>} : memref<8x1xf32, #tpu.memory_space<vmem>>, vector<8x1xf32>,
    } else {
    }
    return
  }
  func.func @transform_0(%arg0: i32, %arg1: i32) -> (i32, i32) {
    %c0_i32 = arith.constant 0 : i32
    return %arg0, %arg1 : i32, i32
  }
  func.func @transform_1(%arg0: i32, %arg1: i32) -> (i32, i32) {
    %c0_i32 = arith.constant 0 : i32
    %c0_i32_0 = arith.constant 0 : i32
    return %arg0, %c0_i32 : i32, i32
  }
}

</mosaic_0001>

<llo_original>
// kernel: tpu_custom_call.1
$region0: #{tpu_custom_call.1}
  #allocation0 [shape = 'u32[]', space=smem, size = 0x4, offset = 0x4, fixed_abs, tag = 'smem constant byte address 0x4 - core index']
  #allocation1 [shape = 'u32[144,128]{1,0:T(1,128)}', space=vmem, size = 0x12000, scoped, tag = 'internal scratch']
  #allocation2 [shape = 'f32[8,128]{1,0:T(8,128)}', space=vmem, size = 0x1000, scoped, tag = 'scratch operand']
  %s0 = inlined_call_operand.hbm [shape: f32[6,16], index: 0, kind: input, shape index: {}]
  %s1 = inlined_call_operand.vmem [shape: f32[8,1], index: 1, kind: output, shape index: {}]
  %s2 = sld [smem:[#allocation0]]
  $region30: #{tpu_custom_call.1} parent=0
    _
  %s4 = ssub.s32 1, %s2
  %s5 = scalar_select 0, %s4, %s2
  $region1: #{tpu_custom_call.1} parent=0
    #allocation3 [shape = 'u8[4096]{0}', space=vmem, size = 0x1000, scoped, tag = 'input window, operand 0, single buffered']
    #allocation4 [shape = 's32[1]{0}', space=sflag, size = 0x4, scoped, tag = 'scoped memory for tpu_custom_call.1']
    %6 = vsyncpa [#allocation4], 0
    // Predicated region
    $region2: #{tpu_custom_call.1} parent=1 // pred_check
      _
    $region3: #{tpu_custom_call.1} parent=1 // pred_check_branch
      %8 = sbr.rel (0) target = $region5
    $region4: #{tpu_custom_call.1} parent=1 // pred_region
      %s10 = ssub.s32 128, 128
      %11 = vsyncadd [#allocation4], %s10
      %s13 = sshll.u32 [#allocation3], 4
      %s14 = int_to_ptr.vmem [resolvable:$true] %s13
      %16 = dma.hbm_to_vmem [thread:$0]  %s0, 128, %s14, [#allocation4]
    $region5: #{tpu_custom_call.1} parent=1 // pred_fallthru
      _
    // Predicated region
    $region6: #{tpu_custom_call.1} parent=1 // pred_check
      _
    $region7: #{tpu_custom_call.1} parent=1 // pred_check_branch
      %18 = sbr.rel (0) target = $region9
    $region8: #{tpu_custom_call.1} parent=1 // pred_region
      %19 = dma.done [#allocation4], 128
    $region9: #{tpu_custom_call.1} parent=1 // pred_fallthru
      _
    %p20 = scmp.eq.s32.totalorder 0, 0
    // Predicated region
    $region10: #{tpu_custom_call.1} parent=1 // pred_check
      %p21 = pneg %p20
    $region11: #{tpu_custom_call.1} parent=1 // pred_check_branch
      %23 = sbr.rel (%p21) target = $region13
    $region12: #{tpu_custom_call.1} parent=1 // pred_region
      %24 = vst [vmem:[#allocation2] sm:$0xff] 0.0
    $region13: #{tpu_custom_call.1} parent=1 // pred_fallthru
      _
    %p25 = scmp.lt.s32.totalorder 0, 0
    // Predicated region
    $region14: #{tpu_custom_call.1} parent=1 // pred_check
      %p26 = pneg %p25
    $region15: #{tpu_custom_call.1} parent=1 // pred_check_branch
      %28 = sbr.rel (%p26) target = $region17
    $region16: #{tpu_custom_call.1} parent=1 // pred_region
      %v29 = vld [vmem:[#allocation2] sm:$0xff]
      %v30 = vld [vmem:[#allocation3] sm:$0xff]
      %v31 = vadd.f32 %v29, %v30
      %32 = vst [vmem:[#allocation2] sm:$0xff] %v31
    $region17: #{tpu_custom_call.1} parent=1 // pred_fallthru
      _
    // Predicated region
    $region18: #{tpu_custom_call.1} parent=1 // pred_check
      %p33 = pneg %p20
    $region19: #{tpu_custom_call.1} parent=1 // pred_check_branch
      %35 = sbr.rel (%p33) target = $region21
    $region20: #{tpu_custom_call.1} parent=1 // pred_region
      %v36 = vld [vmem:[#allocation3] sm:$0xff]
      %v37 = vlaneseq
      %v38 = vand.u32 %v37, 127
      %v39 = vld [vmem:[#allocation2] sm:$0xff]
      %vm40 = vcmp.lt.s32.totalorder %v38, 16
      %v41 = vsel %vm40, %v36, 0.0
      %v42 = vadd.f32 %v39, %v41
      %43 = vst [vmem:[#allocation2] sm:$0xff] %v42
      %v44 = vld [vmem:[#allocation2] sm:$0xff]
      %45 = vadd.xlane.f32.xlu0 %v44
      %v46 = vpop.xlane.xlu0 %45
      %v47 = vmul.f32 %v46, 0.0625
      %vm48 = vcmask 7168
      %49 = vst.msk [vmem:[%s1] sm:$0xff] %vm48, %v47
    $region21: #{tpu_custom_call.1} parent=1 // pred_fallthru
      _
    // Predicated region
    $region22: #{tpu_custom_call.1} parent=1 // pred_check
      _
    $region23: #{tpu_custom_call.1} parent=1 // pred_check_branch
      %51 = sbr.rel (0) target = $region25
    $region24: #{tpu_custom_call.1} parent=1 // pred_region
      _
    $region25: #{tpu_custom_call.1} parent=1 // pred_fallthru
      _
    // Predicated region
    $region26: #{tpu_custom_call.1} parent=1 // pred_check
      _
    $region27: #{tpu_custom_call.1} parent=1 // pred_check_branch
      %53 = sbr.rel (0) target = $region29
    $region28: #{tpu_custom_call.1} parent=1 // pred_region
      _
    $region29: #{tpu_custom_call.1} parent=1 // pred_fallthru
      _
    %54 = vsyncpa [#allocation4], 1

</llo_original>
